<compile_context>
chip_gen: v7x
topology: tpu7x:2x2x1
jax: 0.10.0
libtpu: 0.0.40
codegen_flags: <defaults>
</compile_context>

<pallas_src>
import functools
import math

import jax
import jax.numpy as jnp
from jax.experimental import pallas as pl
from jax.experimental.pallas import tpu as pltpu

# Scoped-VMEM cap: v7x has 64 MiB physical (vs 128 MiB on v5e/v6e); 36 MiB
# leaves compiler-scratch headroom on all three generations.
_VMEM_LIMIT = 36 * 1024 * 1024
# If the full-S K/V head-group slice (double buffered) fits under this budget,
# collapse the kv grid axis (one-pass softmax; K/V DMA'd once per head group).
_KV_VMEM_BUDGET = 16 * 1024 * 1024


def _choose_tile(total, preferred, multiple=8):
    """Largest tile <= preferred that divides `total` and is a multiple of
    `multiple` (falls back to the full extent, which is always a legal block)."""
    if total <= preferred:
        return total
    t = (preferred // multiple) * multiple
    while t >= multiple:
        if total % t == 0:
            return t
        t -= multiple
    return total  # TODO(synk): ragged tiling for awkward sequence lengths


# ---------------------------------------------------------------------------
# Kernels
# ---------------------------------------------------------------------------

def _qkv_proj_self_kernel(x_ref, w_ref, b_ref, qo_ref, ko_ref, vo_ref, *,
                          q_scale, mm_dtype):
    # Self-attention fast path: one activation read feeds all three projections.
    # x (1,tS,D)  w (3,D,tN)  b (3,1,tN)  outputs (1,tS,tN).
    x = x_ref[0].astype(mm_dtype)
    q = jnp.dot(x, w_ref[0].astype(mm_dtype),
                preferred_element_type=jnp.float32) + b_ref[0]
    qo_ref[0] = (q * q_scale).astype(qo_ref.dtype)          # scale folded here
    ko_ref[0] = (jnp.dot(x, w_ref[1].astype(mm_dtype),
                         preferred_element_type=jnp.float32)
                 + b_ref[1]).astype(ko_ref.dtype)
    vo_ref[0] = (jnp.dot(x, w_ref[2].astype(mm_dtype),
                         preferred_element_type=jnp.float32)
                 + b_ref[2]).astype(vo_ref.dtype)


def _qkv_proj_cross_kernel(xq_ref, xk_ref, xv_ref, w_ref, b_ref,
                           qo_ref, ko_ref, vo_ref, *, q_scale, mm_dtype):
    q = jnp.dot(xq_ref[0].astype(mm_dtype), w_ref[0].astype(mm_dtype),
                preferred_element_type=jnp.float32) + b_ref[0]
    qo_ref[0] = (q * q_scale).astype(qo_ref.dtype)
    ko_ref[0] = (jnp.dot(xk_ref[0].astype(mm_dtype), w_ref[1].astype(mm_dtype),
                         preferred_element_type=jnp.float32)
                 + b_ref[1]).astype(ko_ref.dtype)
    vo_ref[0] = (jnp.dot(xv_ref[0].astype(mm_dtype), w_ref[2].astype(mm_dtype),
                         preferred_element_type=jnp.float32)
                 + b_ref[2]).astype(vo_ref.dtype)


def _out_proj_kernel(x_ref, w_ref, b_ref, o_ref, *, mm_dtype):
    # x (1,tS,D)  w (D,tN)  b (1,tN)  o (1,tS,tN).
    o_ref[0] = (jnp.dot(x_ref[0].astype(mm_dtype), w_ref[...].astype(mm_dtype),
                        preferred_element_type=jnp.float32)
                + b_ref[...]).astype(o_ref.dtype)


def _attn_onepass_kernel(q_ref, k_ref, v_ref, o_ref, *, hg, dh, mm_dtype,
                         exp_dtype):
    # Full K/V resident in VMEM: single-pass softmax, no recurrence, no scratch.
    # Blocks: q/o (1, tq, hg*dh), k/v (1, S, hg*dh).
    tq = q_ref.shape[1]
    skv = k_ref.shape[1]
    # Heads lead so the MXU dots are plain leading-batch matmuls.
    q = jnp.swapaxes(q_ref[0].reshape(tq, hg, dh), 0, 1).astype(mm_dtype)
    k = jnp.swapaxes(k_ref[0].reshape(skv, hg, dh), 0, 1).astype(mm_dtype)
    v = jnp.swapaxes(v_ref[0].reshape(skv, hg, dh), 0, 1).astype(mm_dtype)

    # q already carries 1/sqrt(dh) (folded into the Q projection).
    s = jnp.einsum("hqd,hkd->hqk", q, k,
                   preferred_element_type=jnp.float32)        # (hg, tq, skv)
    m = jnp.max(s, axis=-1, keepdims=True)
    p = jnp.exp((s - m).astype(exp_dtype))
    l = jnp.sum(p.astype(jnp.float32), axis=-1)               # (hg, tq)
    pv = jnp.einsum("hqk,hkd->hqd", p.astype(mm_dtype), v,
                    preferred_element_type=jnp.float32)       # (hg, tq, dh)
    out = pv * pl.reciprocal(l, approx=False)[..., None]
    for h in range(hg):                                       # per-head stores
        o_ref[0, :, h * dh:(h + 1) * dh] = out[h].astype(o_ref.dtype)


def _flash_attn_kernel(q_ref, k_ref, v_ref, o_ref, q_sc, m_sc, l_sc, acc_sc, *,
                       hg, dh, mm_dtype, exp_dtype):
    # Flash/online-softmax path for long sequences.
    # Grid: (B, head_groups, S//tq, S//tkv); kv is the (innermost) reduction.
    kv = pl.program_id(3)
    tq = q_ref.shape[1]
    tkv = k_ref.shape[1]

    @pl.when(kv == 0)
    def _():
        # Stage the kv-invariant q work (reshape / relayout / cast) once per
        # q tile instead of once per kv step.
        q_sc[...] = jnp.swapaxes(q_ref[0].reshape(tq, hg, dh), 0, 1
                                 ).astype(mm_dtype)
        m_sc[...] = jnp.full(m_sc.shape, -jnp.inf, dtype=m_sc.dtype)
        l_sc[...] = jnp.zeros(l_sc.shape, dtype=l_sc.dtype)
        acc_sc[...] = jnp.zeros(acc_sc.shape, dtype=acc_sc.dtype)

    k = jnp.swapaxes(k_ref[0].reshape(tkv, hg, dh), 0, 1).astype(mm_dtype)
    v = jnp.swapaxes(v_ref[0].reshape(tkv, hg, dh), 0, 1).astype(mm_dtype)

    s = jnp.einsum("hqd,hkd->hqk", q_sc[...], k,
                   preferred_element_type=jnp.float32)        # (hg, tq, tkv)

    m_prev = m_sc[...]                                        # (hg, tq) lane-dense
    m_new = jnp.maximum(m_prev, jnp.max(s, axis=-1))
    alpha = jnp.exp(m_prev - m_new)
    p = jnp.exp((s - m_new[..., None]).astype(exp_dtype))
    l_sc[...] = alpha * l_sc[...] + jnp.sum(p.astype(jnp.float32), axis=-1)
    pv = jnp.einsum("hqk,hkd->hqd", p.astype(mm_dtype), v,
                    preferred_element_type=jnp.float32)       # (hg, tq, dh)
    acc_sc[...] = alpha[..., None] * acc_sc[...] + pv
    m_sc[...] = m_new

    @pl.when(kv == pl.num_programs(3) - 1)
    def _():
        out = acc_sc[...] * pl.reciprocal(l_sc[...], approx=False)[..., None]
        for h in range(hg):
            o_ref[0, :, h * dh:(h + 1) * dh] = out[h].astype(o_ref.dtype)


# ---------------------------------------------------------------------------
# Wrappers
# ---------------------------------------------------------------------------

def _qkv_projection(q, k, v, w_qkv, b_qkv, *, q_scale, mm_dtype, act_dtype,
                    tS=None, tN=None):
    """q/k/v: [B,S,D]; w_qkv: [3,D,D]; b_qkv: [3,1,D] -> (q',k',v') each [B,S,D]."""
    B, S, D = q.shape
    assert k.shape == q.shape and v.shape == q.shape, (
        "TODO(synk): distinct key/value sequence lengths need separate grids")
    Dout = w_qkv.shape[-1]
    tS = _choose_tile(S, 1024) if tS is None else tS
    tN = _choose_tile(Dout, 512, multiple=128) if tN is None else tN
    nS, nN = S // tS, Dout // tN

    x_spec = pl.BlockSpec((1, tS, D), lambda b, s, n: (b, s, 0))
    w_spec = pl.BlockSpec((3, D, tN), lambda b, s, n: (0, 0, n))
    b_spec = pl.BlockSpec((3, 1, tN), lambda b, s, n: (0, 0, n))
    o_spec = pl.BlockSpec((1, tS, tN), lambda b, s, n: (b, s, n))
    o_sds = jax.ShapeDtypeStruct((B, S, Dout), act_dtype)

    in_item = jnp.dtype(q.dtype).itemsize
    w_item = jnp.dtype(w_qkv.dtype).itemsize
    out_item = jnp.dtype(act_dtype).itemsize

    # Self-attention fast path: the activations are read from HBM once.
    # (Object-identity check — only hits when literally the same value is passed.)
    self_attn = (q is k) and (k is v)
    if self_attn:
        kernel = functools.partial(_qkv_proj_self_kernel,
                                   q_scale=q_scale, mm_dtype=mm_dtype)
        in_specs, args = [x_spec, w_spec, b_spec], (q, w_qkv, b_qkv)
        act_bytes = B * S * D * in_item
    else:
        kernel = functools.partial(_qkv_proj_cross_kernel,
                                   q_scale=q_scale, mm_dtype=mm_dtype)
        in_specs, args = ([x_spec, x_spec, x_spec, w_spec, b_spec],
                          (q, k, v, w_qkv, b_qkv))
        act_bytes = 3 * B * S * D * in_item

    return pl.pallas_call(
        kernel,
        out_shape=(o_sds, o_sds, o_sds),
        grid_spec=pltpu.PrefetchScalarGridSpec(
            num_scalar_prefetch=0,
            grid=(B, nS, nN),
            in_specs=in_specs,
            out_specs=(o_spec, o_spec, o_spec),
        ),
        compiler_params=pltpu.CompilerParams(
            dimension_semantics=("parallel", "parallel", "parallel"),
            vmem_limit_bytes=_VMEM_LIMIT),
        cost_estimate=pl.CostEstimate(
            flops=3 * 2 * B * S * D * Dout,
            transcendentals=0,
            bytes_accessed=int(act_bytes
                               + B * nS * 3 * (D * Dout + Dout) * w_item
                               + 3 * B * S * Dout * out_item)),
    )(*args)


def _mha_attention(qp, kp, vp, num_heads, *, mm_dtype, exp_dtype,
                   tq=None, tkv=None):
    """Per-head attention on projected [B,S,D] tensors; heads sliced via BlockSpec."""
    B, S, D = qp.shape
    H = num_heads
    Dh = D // H

    # Head grouping: last block dim = HG*Dh, lane-dense (multiple of 128) or
    # the full model dim D (always a legal layout).
    HG = 1 if Dh >= 128 else min(H, max(1, 128 // Dh))
    while H % HG:
        HG -= 1
    if (HG * Dh) % 128 != 0 and HG * Dh != D:
        HG = H
    G = H // HG
    Wg = HG * Dh

    itemsize = jnp.dtype(qp.dtype).itemsize
    if tq is None:
        tq = _choose_tile(S, 512)
    if tkv is None:
        # One-pass fast path: collapse kv axis if full-S K/V fits (x2 buffers).
        tkv = S if 2 * 2 * S * Wg * itemsize <= _KV_VMEM_BUDGET \
            else _choose_tile(S, 512)
    nQ, nKV = S // tq, S // tkv

    out_sds = jax.ShapeDtypeStruct((B, S, D), qp.dtype)
    flops = 4 * B * H * S * S * Dh
    exps = B * H * S * S

    if nKV == 1:
        # K/V index depends only on (b, g): DMA'd once per head group; no
        # online-softmax recurrence.  (On v7x the parallel axes B*G*nQ feed
        # both TensorCores.)
        kernel = functools.partial(_attn_onepass_kernel, hg=HG, dh=Dh,
                                   mm_dtype=mm_dtype, exp_dtype=exp_dtype)
        return pl.pallas_call(
            kernel,
            out_shape=out_sds,
            grid_spec=pltpu.PrefetchScalarGridSpec(
                num_scalar_prefetch=0,
                grid=(B, G, nQ),
                in_specs=[
                    pl.BlockSpec((1, tq, Wg), lambda b, g, qi: (b, qi, g)),
                    pl.BlockSpec((1, S, Wg), lambda b, g, qi: (b, 0, g)),
                    pl.BlockSpec((1, S, Wg), lambda b, g, qi: (b, 0, g)),
                ],
                out_specs=pl.BlockSpec((1, tq, Wg), lambda b, g, qi: (b, qi, g)),
            ),
            compiler_params=pltpu.CompilerParams(
                dimension_semantics=("parallel", "parallel", "parallel"),
                vmem_limit_bytes=_VMEM_LIMIT),
            cost_estimate=pl.CostEstimate(
                flops=flops, transcendentals=exps,
                bytes_accessed=4 * B * S * D * itemsize),
        )(qp, kp, vp)

    kernel = functools.partial(_flash_attn_kernel, hg=HG, dh=Dh,
                               mm_dtype=mm_dtype, exp_dtype=exp_dtype)
    return pl.pallas_call(
        kernel,
        out_shape=out_sds,
        grid_spec=pltpu.PrefetchScalarGridSpec(
            num_scalar_prefetch=0,
            grid=(B, G, nQ, nKV),
            in_specs=[
                pl.BlockSpec((1, tq, Wg), lambda b, g, qi, ki: (b, qi, g)),
                pl.BlockSpec((1, tkv, Wg), lambda b, g, qi, ki: (b, ki, g)),
                pl.BlockSpec((1, tkv, Wg), lambda b, g, qi, ki: (b, ki, g)),
            ],
            out_specs=pl.BlockSpec((1, tq, Wg), lambda b, g, qi, ki: (b, qi, g)),
            scratch_shapes=[
                pltpu.VMEM((HG, tq, Dh), mm_dtype),     # staged (scaled) q tile
                pltpu.VMEM((HG, tq), jnp.float32),      # running max m (lane-dense)
                pltpu.VMEM((HG, tq), jnp.float32),      # running sum l (lane-dense)
                pltpu.VMEM((HG, tq, Dh), jnp.float32),  # running output accumulator
            ],
        ),
        compiler_params=pltpu.CompilerParams(
            dimension_semantics=("parallel", "parallel", "parallel", "arbitrary"),
            vmem_limit_bytes=_VMEM_LIMIT),
        cost_estimate=pl.CostEstimate(
            flops=flops, transcendentals=exps,
            # K/V are re-streamed once per q tile (nQ-fold over-read).
            bytes_accessed=(2 + 2 * nQ) * B * S * D * itemsize),
    )(qp, kp, vp)


def _out_projection(x, wo, bo, *, mm_dtype, out_dtype, tS=None, tN=None):
    """x: [B,S,D], wo: [D,Dout], bo: [Dout] -> [B,S,Dout]."""
    B, S, D = x.shape
    Dout = wo.shape[1]
    tS = _choose_tile(S, 1024) if tS is None else tS
    tN = _choose_tile(Dout, 512, multiple=128) if tN is None else tN
    nS, nN = S // tS, Dout // tN

    in_item = jnp.dtype(x.dtype).itemsize
    w_item = jnp.dtype(wo.dtype).itemsize
    out_item = jnp.dtype(out_dtype).itemsize

    return pl.pallas_call(
        functools.partial(_out_proj_kernel, mm_dtype=mm_dtype),
        out_shape=jax.ShapeDtypeStruct((B, S, Dout), out_dtype),
        grid_spec=pltpu.PrefetchScalarGridSpec(
            num_scalar_prefetch=0,
            grid=(B, nS, nN),
            in_specs=[
                pl.BlockSpec((1, tS, D), lambda b, s, n: (b, s, 0)),
                pl.BlockSpec((D, tN), lambda b, s, n: (0, n)),
                pl.BlockSpec((1, tN), lambda b, s, n: (0, n)),
            ],
            out_specs=pl.BlockSpec((1, tS, tN), lambda b, s, n: (b, s, n)),
        ),
        compiler_params=pltpu.CompilerParams(
            dimension_semantics=("parallel", "parallel", "parallel"),
            vmem_limit_bytes=_VMEM_LIMIT),
        cost_estimate=pl.CostEstimate(
            flops=2 * B * S * D * Dout, transcendentals=0,
            bytes_accessed=int(B * S * D * in_item
                               + B * nS * (D * Dout + Dout) * w_item
                               + B * S * Dout * out_item)),
    )(x, wo, bo.reshape(1, Dout))


def multi_head_attention(q, k, v, params, num_heads, mask=None,
                         matmul_dtype=jnp.bfloat16, exp_dtype=None,
                         tq=None, tkv=None):
    """Forward of BaseMultiHeadAttention (transform_inputs=True, OUTPUT_ONLY).

    matmul_dtype: operand dtype for every MXU matmul and for the intermediate
        (projected) activations in HBM; accumulation is always f32.  bf16 is the
        right default on v5e/v6e/v7x; pass jnp.float32 for exact f32 parity.
    exp_dtype:    dtype of the softmax exp (default f32).  bf16 attacks the EUP
        bottleneck on v6e/v7x for small Dh; keep f32 on v5e (no bf16 EUP).
    """
    assert mask is None  # TODO(synk): masked attention not specified by the base class
    B, S, D = q.shape
    assert D % num_heads == 0
    exp_dtype = jnp.float32 if exp_dtype is None else exp_dtype
    q_scale = 1.0 / math.sqrt(D // num_heads)
    # Store intermediates in the matmul dtype (halves HBM traffic under bf16).
    act_dtype = (q.dtype if jnp.dtype(matmul_dtype) == jnp.dtype(jnp.float32)
                 else jnp.dtype(matmul_dtype))

    qp, kp, vp = _qkv_projection(q, k, v, params["w_qkv"], params["b_qkv"],
                                 q_scale=q_scale, mm_dtype=matmul_dtype,
                                 act_dtype=act_dtype)
    attn = _mha_attention(qp, kp, vp, num_heads, mm_dtype=matmul_dtype,
                          exp_dtype=exp_dtype, tq=tq, tkv=tkv)
    return _out_projection(attn, params["wo"], params["bo"],
                           mm_dtype=matmul_dtype, out_dtype=q.dtype)


# ---------------------------------------------------------------------------
# Deterministic parameter init + pure-JAX reference
# ---------------------------------------------------------------------------

def init_params(key, d_model):
    ks = jax.random.split(key, 8)
    std = 1.0 / math.sqrt(d_model)
    n = lambda kk, shape, s: jax.random.normal(kk, shape, jnp.float32) * s
    wq, wk, wv = (n(ks[i], (d_model, d_model), std) for i in range(3))
    bq, bk, bv = (n(ks[4 + i], (d_model,), 0.1) for i in range(3))
    return {
        # Q/K/V weights stacked ONCE at init time (not per forward call).
        "w_qkv": jnp.stack([wq, wk, wv]),              # (3, D, D)
        "b_qkv": jnp.stack([bq, bk, bv])[:, None, :],  # (3, 1, D)
        "wo": n(ks[3], (d_model, d_model), std),
        "bo": n(ks[7], (d_model,), 0.1),
    }


def reference_mha(q, k, v, params, num_heads):
    B, S, D = q.shape
    H, Dh = num_heads, D // num_heads
    qp = q @ params["w_qkv"][0] + params["b_qkv"][0, 0]
    kp = k @ params["w_qkv"][1] + params["b_qkv"][1, 0]
    vp = v @ params["w_qkv"][2] + params["b_qkv"][2, 0]
    sh = lambda x: x.reshape(B, S, H, Dh).transpose(0, 2, 1, 3)
    qh, kh, vh = sh(qp), sh(kp), sh(vp)
    scores = jnp.einsum("bhqd,bhkd->bhqk", qh, kh) / math.sqrt(Dh)
    attn = jax.nn.softmax(scores, axis=-1)
    heads = jnp.einsum("bhqk,bhkd->bhqd", attn, vh)
    merged = heads.transpose(0, 2, 1, 3).reshape(B, S, D)
    return merged @ params["wo"] + params["bo"]


if __name__ == "__main__":
    key = jax.random.PRNGKey(0)

    # --- Config 1: small cross/self attention (one-pass softmax fast path) ---
    B, S, D, H = 2, 8, 32, 4
    kq, kk, kv_, kp = jax.random.split(key, 4)
    q = jax.random.normal(kq, (B, S, D), jnp.float32)
    k = jax.random.normal(kk, (B, S, D), jnp.float32)
    v = jax.random.normal(kv_, (B, S, D), jnp.float32)
    params = init_params(kp, D)
    ref = reference_mha(q, k, v, params, num_heads=H)

    # Exact-parity path (f32 MXU operands).
    out_f32 = jax.block_until_ready(
        multi_head_attention(q, k, v, params, num_heads=H,
                             matmul_dtype=jnp.float32))
    assert out_f32.shape == (B, S, D)
    assert jnp.allclose(out_f32, ref, atol=1e-4, rtol=1e-4), "f32 cross-attn mismatch"

    # Optimized path: bf16 MXU operands, f32 accumulation.
    out_bf16 = jax.block_until_ready(
        multi_head_attention(q, k, v, params, num_heads=H))
    assert jnp.allclose(out_bf16, ref, atol=5e-2, rtol=5e-2), "bf16 cross-attn mismatch"

    # Self-attention fast path (single activation read) + bf16 softmax exp.
    out_self = jax.block_until_ready(
        multi_head_attention(q, q, q, params, num_heads=H,
                             exp_dtype=jnp.bfloat16))
    ref_self = reference_mha(q, q, q, params, num_heads=H)
    assert jnp.allclose(out_self, ref_self, atol=5e-2, rtol=5e-2), "self-attn mismatch"

    # --- Config 2: longer sequence, forces the flash (online-softmax) path ---
    B2, S2, D2, H2 = 1, 256, 32, 4
    k1, k2 = jax.random.split(jax.random.PRNGKey(1))
    x2 = jax.random.normal(k1, (B2, S2, D2), jnp.float32)
    params2 = init_params(k2, D2)
    ref2 = reference_mha(x2, x2, x2, params2, num_heads=H2)
    out2 = jax.block_until_ready(
        multi_head_attention(x2, x2, x2, params2, num_heads=H2,
                             matmul_dtype=jnp.float32, tq=128, tkv=128))
    assert jnp.allclose(out2, ref2, atol=1e-4, rtol=1e-4), "flash-path mismatch"

    print("KERNEL_OK")
</pallas_src>

<mosaic_0001>
module attributes {stable_mosaic.version = 11 : i64} {
  func.func @_qkv_proj_cross_kernel(%arg0: i32, %arg1: i32, %arg2: i32, %arg3: memref<1x8x32xf32, #tpu.memory_space<vmem>>, %arg4: memref<1x8x32xf32, #tpu.memory_space<vmem>>, %arg5: memref<1x8x32xf32, #tpu.memory_space<vmem>>, %arg6: memref<3x32x32xf32, #tpu.memory_space<vmem>>, %arg7: memref<3x1x32xf32, #tpu.memory_space<vmem>>, %arg8: memref<1x8x32xf32, #tpu.memory_space<vmem>>, %arg9: memref<1x8x32xf32, #tpu.memory_space<vmem>>, %arg10: memref<1x8x32xf32, #tpu.memory_space<vmem>>) attributes {dimension_semantics = [#tpu.dimension_semantics<parallel>, #tpu.dimension_semantics<parallel>, #tpu.dimension_semantics<parallel>], iteration_bounds = array<i64: 2, 1, 1>, scalar_prefetch = 0 : i64, scratch_operands = 0 : i64, tpu.core_type = #tpu.core_type<tc>, window_params = [{transform_indices = @transform_0, window_bounds = array<i64: 1, 8, 32>}, {transform_indices = @transform_1, window_bounds = array<i64: 1, 8, 32>}, {transform_indices = @transform_2, window_bounds = array<i64: 1, 8, 32>}, {transform_indices = @transform_3, window_bounds = array<i64: 3, 32, 32>}, {transform_indices = @transform_4, window_bounds = array<i64: 3, 1, 32>}, {transform_indices = @transform_5, window_bounds = array<i64: 1, 8, 32>}, {transform_indices = @transform_6, window_bounds = array<i64: 1, 8, 32>}, {transform_indices = @transform_7, window_bounds = array<i64: 1, 8, 32>}]} {
    %c0 = arith.constant 0 : index
    %c0_0 = arith.constant 0 : index
    %c0_1 = arith.constant 0 : index
    %0 = vector.load %arg3[%c0, %c0_0, %c0_1] : memref<1x8x32xf32, #tpu.memory_space<vmem>>, vector<1x8x32xf32>
    %1 = vector.shape_cast %0 : vector<1x8x32xf32> to vector<8x32xf32>
    %c0_2 = arith.constant 0 : index
    %c0_3 = arith.constant 0 : index
    %c0_4 = arith.constant 0 : index
    %2 = vector.load %arg6[%c0_2, %c0_3, %c0_4] : memref<3x32x32xf32, #tpu.memory_space<vmem>>, vector<1x32x32xf32>
    %3 = vector.shape_cast %2 : vector<1x32x32xf32> to vector<32x32xf32>
    %cst = arith.constant dense<0.000000e+00> : vector<8x32xf32>
    %4 = tpu.matmul %1, %3, %cst {dimension_numbers = #tpu.dot_dimension_numbers<[1], [0], [0], [1], [0, 0, 1, 1], [], []>} : vector<8x32xf32>, vector<32x32xf32>, vector<8x32xf32> -> vector<8x32xf32>
    %c0_5 = arith.constant 0 : index
    %c0_6 = arith.constant 0 : index
    %c0_7 = arith.constant 0 : index
    %5 = vector.load %arg7[%c0_5, %c0_6, %c0_7] : memref<3x1x32xf32, #tpu.memory_space<vmem>>, vector<1x1x32xf32>
    %6 = vector.shape_cast %5 : vector<1x1x32xf32> to vector<1x32xf32>
    %7 = vector.broadcast %6 : vector<1x32xf32> to vector<8x32xf32>
    %8 = arith.addf %4, %7 : vector<8x32xf32>
    %cst_8 = arith.constant 0.353553385 : f32
    %9 = vector.broadcast %cst_8 : f32 to vector<8x32xf32>
    %10 = arith.mulf %8, %9 : vector<8x32xf32>
    %c0_9 = arith.constant 0 : index
    %c0_10 = arith.constant 0 : index
    %c0_11 = arith.constant 0 : index
    %11 = vector.load %arg8[%c0_9, %c0_10, %c0_11] : memref<1x8x32xf32, #tpu.memory_space<vmem>>, vector<1x8x32xf32>
    %12 = vector.shape_cast %11 : vector<1x8x32xf32> to vector<8x32xf32>
    %13 = vector.shape_cast %10 : vector<8x32xf32> to vector<1x8x32xf32>
    tpu.vector_store %arg8[%c0_9, %c0_10, %c0_11], %13 {strides = array<i32>} : memref<1x8x32xf32, #tpu.memory_space<vmem>>, vector<1x8x32xf32>,
    %c0_12 = arith.constant 0 : index
    %c0_13 = arith.constant 0 : index
    %c0_14 = arith.constant 0 : index
    %14 = vector.load %arg4[%c0_12, %c0_13, %c0_14] : memref<1x8x32xf32, #tpu.memory_space<vmem>>, vector<1x8x32xf32>
    %15 = vector.shape_cast %14 : vector<1x8x32xf32> to vector<8x32xf32>
    %c1 = arith.constant 1 : index
    %c0_15 = arith.constant 0 : index
    %c0_16 = arith.constant 0 : index
    %16 = vector.load %arg6[%c1, %c0_15, %c0_16] : memref<3x32x32xf32, #tpu.memory_space<vmem>>, vector<1x32x32xf32>
    %17 = vector.shape_cast %16 : vector<1x32x32xf32> to vector<32x32xf32>
    %cst_17 = arith.constant dense<0.000000e+00> : vector<8x32xf32>
    %18 = tpu.matmul %15, %17, %cst_17 {dimension_numbers = #tpu.dot_dimension_numbers<[1], [0], [0], [1], [0, 0, 1, 1], [], []>} : vector<8x32xf32>, vector<32x32xf32>, vector<8x32xf32> -> vector<8x32xf32>
    %c1_18 = arith.constant 1 : index
    %c0_19 = arith.constant 0 : index
    %c0_20 = arith.constant 0 : index
    %19 = vector.load %arg7[%c1_18, %c0_19, %c0_20] : memref<3x1x32xf32, #tpu.memory_space<vmem>>, vector<1x1x32xf32>
    %20 = vector.shape_cast %19 : vector<1x1x32xf32> to vector<1x32xf32>
    %21 = vector.broadcast %20 : vector<1x32xf32> to vector<8x32xf32>
    %22 = arith.addf %18, %21 : vector<8x32xf32>
    %c0_21 = arith.constant 0 : index
    %c0_22 = arith.constant 0 : index
    %c0_23 = arith.constant 0 : index
    %23 = vector.load %arg9[%c0_21, %c0_22, %c0_23] : memref<1x8x32xf32, #tpu.memory_space<vmem>>, vector<1x8x32xf32>
    %24 = vector.shape_cast %23 : vector<1x8x32xf32> to vector<8x32xf32>
    %25 = vector.shape_cast %22 : vector<8x32xf32> to vector<1x8x32xf32>
    tpu.vector_store %arg9[%c0_21, %c0_22, %c0_23], %25 {strides = array<i32>} : memref<1x8x32xf32, #tpu.memory_space<vmem>>, vector<1x8x32xf32>,
    %c0_24 = arith.constant 0 : index
    %c0_25 = arith.constant 0 : index
    %c0_26 = arith.constant 0 : index
    %26 = vector.load %arg5[%c0_24, %c0_25, %c0_26] : memref<1x8x32xf32, #tpu.memory_space<vmem>>, vector<1x8x32xf32>
    %27 = vector.shape_cast %26 : vector<1x8x32xf32> to vector<8x32xf32>
    %c2 = arith.constant 2 : index
    %c0_27 = arith.constant 0 : index
    %c0_28 = arith.constant 0 : index
    %28 = vector.load %arg6[%c2, %c0_27, %c0_28] : memref<3x32x32xf32, #tpu.memory_space<vmem>>, vector<1x32x32xf32>
    %29 = vector.shape_cast %28 : vector<1x32x32xf32> to vector<32x32xf32>
    %cst_29 = arith.constant dense<0.000000e+00> : vector<8x32xf32>
    %30 = tpu.matmul %27, %29, %cst_29 {dimension_numbers = #tpu.dot_dimension_numbers<[1], [0], [0], [1], [0, 0, 1, 1], [], []>} : vector<8x32xf32>, vector<32x32xf32>, vector<8x32xf32> -> vector<8x32xf32>
    %c2_30 = arith.constant 2 : index
    %c0_31 = arith.constant 0 : index
    %c0_32 = arith.constant 0 : index
    %31 = vector.load %arg7[%c2_30, %c0_31, %c0_32] : memref<3x1x32xf32, #tpu.memory_space<vmem>>, vector<1x1x32xf32>
    %32 = vector.shape_cast %31 : vector<1x1x32xf32> to vector<1x32xf32>
    %33 = vector.broadcast %32 : vector<1x32xf32> to vector<8x32xf32>
    %34 = arith.addf %30, %33 : vector<8x32xf32>
    %c0_33 = arith.constant 0 : index
    %c0_34 = arith.constant 0 : index
    %c0_35 = arith.constant 0 : index
    %35 = vector.load %arg10[%c0_33, %c0_34, %c0_35] : memref<1x8x32xf32, #tpu.memory_space<vmem>>, vector<1x8x32xf32>
    %36 = vector.shape_cast %35 : vector<1x8x32xf32> to vector<8x32xf32>
    %37 = vector.shape_cast %34 : vector<8x32xf32> to vector<1x8x32xf32>
    tpu.vector_store %arg10[%c0_33, %c0_34, %c0_35], %37 {strides = array<i32>} : memref<1x8x32xf32, #tpu.memory_space<vmem>>, vector<1x8x32xf32>,
    return
  }
  func.func @transform_0(%arg0: i32, %arg1: i32, %arg2: i32) -> (i32, i32, i32) {
    %c0_i32 = arith.constant 0 : i32
    %c0_i32_0 = arith.constant 0 : i32
    return %arg0, %arg1, %c0_i32 : i32, i32, i32
  }
  func.func @transform_1(%arg0: i32, %arg1: i32, %arg2: i32) -> (i32, i32, i32) {
    %c0_i32 = arith.constant 0 : i32
    %c0_i32_0 = arith.constant 0 : i32
    return %arg0, %arg1, %c0_i32 : i32, i32, i32
  }
  func.func @transform_2(%arg0: i32, %arg1: i32, %arg2: i32) -> (i32, i32, i32) {
    %c0_i32 = arith.constant 0 : i32
    %c0_i32_0 = arith.constant 0 : i32
    return %arg0, %arg1, %c0_i32 : i32, i32, i32
  }
  func.func @transform_3(%arg0: i32, %arg1: i32, %arg2: i32) -> (i32, i32, i32) {
    %c0_i32 = arith.constant 0 : i32
    %c0_i32_0 = arith.constant 0 : i32
    %c0_i32_1 = arith.constant 0 : i32
    return %c0_i32, %c0_i32_0, %arg2 : i32, i32, i32
  }
  func.func @transform_4(%arg0: i32, %arg1: i32, %arg2: i32) -> (i32, i32, i32) {
    %c0_i32 = arith.constant 0 : i32
    %c0_i32_0 = arith.constant 0 : i32
    %c0_i32_1 = arith.constant 0 : i32
    return %c0_i32, %c0_i32_0, %arg2 : i32, i32, i32
  }
  func.func @transform_5(%arg0: i32, %arg1: i32, %arg2: i32) -> (i32, i32, i32) {
    %c0_i32 = arith.constant 0 : i32
    return %arg0, %arg1, %arg2 : i32, i32, i32
  }
  func.func @transform_6(%arg0: i32, %arg1: i32, %arg2: i32) -> (i32, i32, i32) {
    %c0_i32 = arith.constant 0 : i32
    return %arg0, %arg1, %arg2 : i32, i32, i32
  }
  func.func @transform_7(%arg0: i32, %arg1: i32, %arg2: i32) -> (i32, i32, i32) {
    %c0_i32 = arith.constant 0 : i32
    return %arg0, %arg1, %arg2 : i32, i32, i32
  }
}

</mosaic_0001>

<llo_original>
// kernel: tpu_custom_call.1
$region0: #{tpu_custom_call.1}
  #allocation0 [shape = 'u32[]', space=smem, size = 0x4, offset = 0x4, fixed_abs, tag = 'smem constant byte address 0x4 - core index']
  #allocation1 [shape = 'u32[144,128]{1,0:T(1,128)}', space=vmem, size = 0x12000, scoped, tag = 'internal scratch']
  %s0 = inlined_call_operand.hbm [shape: f32[2,8,32], index: 0, kind: input, shape index: {}]
  %s1 = inlined_call_operand.hbm [shape: f32[2,8,32], index: 1, kind: input, shape index: {}]
  %s2 = inlined_call_operand.hbm [shape: f32[2,8,32], index: 2, kind: input, shape index: {}]
  %s3 = inlined_call_operand.hbm [shape: f32[3,32,32], index: 3, kind: input, shape index: {}]
  %s4 = inlined_call_operand.vmem [shape: f32[3,1,32], index: 4, kind: input, shape index: {}]
  %s5 = inlined_call_operand.hbm [shape: f32[2,8,32], index: 5, kind: output, shape index: {0}]
  %s6 = inlined_call_operand.hbm [shape: f32[2,8,32], index: 6, kind: output, shape index: {1}]
  %s7 = inlined_call_operand.hbm [shape: f32[2,8,32], index: 7, kind: output, shape index: {2}]
  %8 = xla_tuple %s5, %s6, %s7
  %s9 = sld [smem:[#allocation0]]
  $region85: #{tpu_custom_call.1} parent=0
    _
  %s11 = ssub.s32 1, %s9
  %s12 = scalar_select 0, %s11, %s9
  $region1: #{tpu_custom_call.1} parent=0
    #allocation2 [shape = 'u8[8192]{0}', space=vmem, size = 0x2000, scoped, tag = 'input window, operand 0']
    #allocation3 [shape = 's32[2]{0}', space=sflag, size = 0x8, scoped, tag = 'scoped memory for tpu_custom_call.1']
    #allocation4 [shape = 's32[2]{0}', space=sflag, size = 0x8, scoped, tag = 'scoped memory for tpu_custom_call.1']
    #allocation5 [shape = 'u8[8192]{0}', space=vmem, size = 0x2000, scoped, tag = 'input window, operand 1']
    #allocation6 [shape = 's32[2]{0}', space=sflag, size = 0x8, scoped, tag = 'scoped memory for tpu_custom_call.1']
    #allocation7 [shape = 'u8[8192]{0}', space=vmem, size = 0x2000, scoped, tag = 'input window, operand 2']
    #allocation8 [shape = 'u8[49152]{0}', space=vmem, size = 0xc000, scoped, tag = 'input window, operand 3, single buffered']
    #allocation9 [shape = 's32[1]{0}', space=sflag, size = 0x4, scoped, tag = 'scoped memory for tpu_custom_call.1']
    #allocation10 [shape = 'u8[8192]{0}', space=vmem, size = 0x2000, scoped, tag = 'output window, operand 0']
    #allocation11 [shape = 'u8[8192]{0}', space=vmem, size = 0x2000, scoped, tag = 'output window, operand 1']
    #allocation12 [shape = 's32[2]{0}', space=sflag, size = 0x8, scoped, tag = 'scoped memory for tpu_custom_call.1']
    #allocation13 [shape = 'u8[8192]{0}', space=vmem, size = 0x2000, scoped, tag = 'output window, operand 2']
    %13 = vsyncpa [#allocation3], 0
    %s14 = scalar_lea.sflag [#allocation3], 1
    %15 = vsyncpa %s14, 0
    %16 = vsyncpa [#allocation6], 0
    %s17 = scalar_lea.sflag [#allocation6], 1
    %18 = vsyncpa %s17, 0
    %19 = vsyncpa [#allocation9], 0
    %20 = vsyncpa [#allocation4], 0
    %s21 = scalar_lea.sflag [#allocation4], 1
    %22 = vsyncpa %s21, 0
    %23 = vsyncpa [#allocation12], 0
    %s24 = scalar_lea.sflag [#allocation12], 1
    %25 = vsyncpa %s24, 0
    loop: start=0, step=1, limit=4
    $region2: #{tpu_custom_call.1} parent=1 // loop_pre_header
      _
    $region3: #{tpu_custom_call.1} parent=1 // loop_header
      %s27 = sphi 0, %s31
      %p28 = scmp.ge.s32.totalorder %s27, 4
      %s34 = sphi 0, %s53
      %s35 = sphi 0, %s49
      %s36 = sphi 0, %s45
      %s37 = sphi 0, %s34
      %s38 = sphi 0, %s35
      %s39 = sphi 0, %s36
      %s40 = sphi 0, %s37
      %s41 = sphi 0, %s38
      %s42 = sphi 0, %s39
      %s58 = sphi 0, %s60
      %s61 = sphi 0, %s58
      %s62 = sphi 0, %s61
      %s78 = sphi 0, %s62
      %s86 = sphi 0, %s88
      %s89 = sphi 0, %s86
      %s90 = sphi 0, %s89
      %s106 = sphi 0, %s90
      %s114 = sphi 0, %s116
      %s117 = sphi 0, %s114
      %s118 = sphi 0, %s117
      %s134 = sphi 0, %s118
      %s140 = sphi 0, %s142
      %s143 = sphi 0, %s140
      %s144 = sphi 0, %s143
      %s160 = sphi 0, %s144
      %s166 = sphi 0, %s168
      %s169 = sphi 0, %s166
      %s170 = sphi 0, %s169
      %s186 = sphi 0, %s170
      %s196 = sphi 0, %s198
      %s199 = sphi 0, %s196
      %s200 = sphi 0, %s199
      %s216 = sphi 0, %s200
      %s226 = sphi 0, %s228
      %s229 = sphi 0, %s226
      %s230 = sphi 0, %s229
      %s246 = sphi 0, %s230
      %s256 = sphi 0, %s258
      %s259 = sphi 0, %s256
      %s260 = sphi 0, %s259
      %s276 = sphi 0, %s260
    $region4: #{tpu_custom_call.1} parent=1 // loop_header_branch
      %30 = sbr.rel (%p28) target = $region8
    $region5: #{tpu_custom_call.1} parent=1 // loop_body
      %s32 = ssub.s32 %s27, 1
      %s33 = ssub.s32 %s27, 2
      %s43 = sadd.s32 1, %s36
      %p44 = scmp.ge.s32.totalorder %s43, 1
      %s45 = scalar_select %p44, 0, %s43
      %s46 = sadd.s32 1, %s35
      %s47 = scalar_select %p44, %s46, %s35
      %p48 = scmp.ge.s32.totalorder %s47, 1
      %s49 = scalar_select %p48, 0, %s47
      %s50 = sadd.s32 1, %s34
      %s51 = scalar_select %p48, %s50, %s34
      %p52 = scmp.ge.s32.totalorder %s51, 2
      %s53 = scalar_select %p52, 0, %s51
      %s54 = ssub.s32 %s34, %s53
      %s55 = ssub.s32 %s35, %s49
      %s56 = sor.u32 %s54, %s55
      %p57 = scmp.eq.s32.totalorder %s56, 0
      %s59 = sadd.s32 %s58, 1
      %s60 = scalar_select %p57, %s58, %s59
      %p63 = pneg %p57
      %p64 = scmp.eq.s32.totalorder %s27, 1
      %p65 = por %p63, %p64
      %p66 = scmp.ne.s32.totalorder %s58, %s61
      %p67 = scmp.eq.s32.totalorder %s27, 0
      %p68 = por %p66, %p67
      %p69 = scmp.ne.s32.totalorder %s58, %s61
      %p70 = scmp.eq.s32.totalorder %s32, 1
      %p71 = por %p69, %p70
      %p72 = scmp.ne.s32.totalorder %s61, %s62
      %p73 = scmp.eq.s32.totalorder %s32, 0
      %p74 = por %p72, %p73
      %p75 = scmp.ne.s32.totalorder %s61, %s62
      %p76 = scmp.eq.s32.totalorder %s33, 1
      %p77 = por %p75, %p76
      %p79 = scmp.ne.s32.totalorder %s62, %s78
      %p80 = scmp.eq.s32.totalorder %s33, 0
      %p81 = por %p79, %p80
      %s82 = ssub.s32 %s34, %s53
      %s83 = ssub.s32 %s35, %s49
      %s84 = sor.u32 %s82, %s83
      %p85 = scmp.eq.s32.totalorder %s84, 0
      %s87 = sadd.s32 %s86, 1
      %s88 = scalar_select %p85, %s86, %s87
      %p91 = pneg %p85
      %p92 = scmp.eq.s32.totalorder %s27, 1
      %p93 = por %p91, %p92
      %p94 = scmp.ne.s32.totalorder %s86, %s89
      %p95 = scmp.eq.s32.totalorder %s27, 0
      %p96 = por %p94, %p95
      %p97 = scmp.ne.s32.totalorder %s86, %s89
      %p98 = scmp.eq.s32.totalorder %s32, 1
      %p99 = por %p97, %p98
      %p100 = scmp.ne.s32.totalorder %s89, %s90
      %p101 = scmp.eq.s32.totalorder %s32, 0
      %p102 = por %p100, %p101
      %p103 = scmp.ne.s32.totalorder %s89, %s90
      %p104 = scmp.eq.s32.totalorder %s33, 1
      %p105 = por %p103, %p104
      %p107 = scmp.ne.s32.totalorder %s90, %s106
      %p108 = scmp.eq.s32.totalorder %s33, 0
      %p109 = por %p107, %p108
      %s110 = ssub.s32 %s34, %s53
      %s111 = ssub.s32 %s35, %s49
      %s112 = sor.u32 %s110, %s111
      %p113 = scmp.eq.s32.totalorder %s112, 0
      %s115 = sadd.s32 %s114, 1
      %s116 = scalar_select %p113, %s114, %s115
      %p119 = pneg %p113
      %p120 = scmp.eq.s32.totalorder %s27, 1
      %p121 = por %p119, %p120
      %p122 = scmp.ne.s32.totalorder %s114, %s117
      %p123 = scmp.eq.s32.totalorder %s27, 0
      %p124 = por %p122, %p123
      %p125 = scmp.ne.s32.totalorder %s114, %s117
      %p126 = scmp.eq.s32.totalorder %s32, 1
      %p127 = por %p125, %p126
      %p128 = scmp.ne.s32.totalorder %s117, %s118
      %p129 = scmp.eq.s32.totalorder %s32, 0
      %p130 = por %p128, %p129
      %p131 = scmp.ne.s32.totalorder %s117, %s118
      %p132 = scmp.eq.s32.totalorder %s33, 1
      %p133 = por %p131, %p132
      %p135 = scmp.ne.s32.totalorder %s118, %s134
      %p136 = scmp.eq.s32.totalorder %s33, 0
      %p137 = por %p135, %p136
      %s138 = ssub.s32 %s36, %s45
      %p139 = scmp.eq.s32.totalorder %s138, 0
      %s141 = sadd.s32 %s140, 1
      %s142 = scalar_select %p139, %s140, %s141
      %p145 = pneg %p139
      %p146 = scmp.eq.s32.totalorder %s27, 1
      %p147 = por %p145, %p146
      %p148 = scmp.ne.s32.totalorder %s140, %s143
      %p149 = scmp.eq.s32.totalorder %s27, 0
      %p150 = por %p148, %p149
      %p151 = scmp.ne.s32.totalorder %s140, %s143
      %p152 = scmp.eq.s32.totalorder %s32, 1
      %p153 = por %p151, %p152
      %p154 = scmp.ne.s32.totalorder %s143, %s144
      %p155 = scmp.eq.s32.totalorder %s32, 0
      %p156 = por %p154, %p155
      %p157 = scmp.ne.s32.totalorder %s143, %s144
      %p158 = scmp.eq.s32.totalorder %s33, 1
      %p159 = por %p157, %p158
      %p161 = scmp.ne.s32.totalorder %s144, %s160
      %p162 = scmp.eq.s32.totalorder %s33, 0
      %p163 = por %p161, %p162
      %s164 = ssub.s32 %s36, %s45
      %p165 = scmp.eq.s32.totalorder %s164, 0
      %s167 = sadd.s32 %s166, 1
      %s168 = scalar_select %p165, %s166, %s167
      %p171 = pneg %p165
      %p172 = scmp.eq.s32.totalorder %s27, 1
      %p173 = por %p171, %p172
      %p174 = scmp.ne.s32.totalorder %s166, %s169
      %p175 = scmp.eq.s32.totalorder %s27, 0
      %p176 = por %p174, %p175
      %p177 = scmp.ne.s32.totalorder %s166, %s169
      %p178 = scmp.eq.s32.totalorder %s32, 1
      %p179 = por %p177, %p178
      %p180 = scmp.ne.s32.totalorder %s169, %s170
      %p181 = scmp.eq.s32.totalorder %s32, 0
      %p182 = por %p180, %p181
      %p183 = scmp.ne.s32.totalorder %s169, %s170
      %p184 = scmp.eq.s32.totalorder %s33, 1
      %p185 = por %p183, %p184
      %p187 = scmp.ne.s32.totalorder %s170, %s186
      %p188 = scmp.eq.s32.totalorder %s33, 0
      %p189 = por %p187, %p188
      %s190 = ssub.s32 %s34, %s53
      %s191 = ssub.s32 %s35, %s49
      %s192 = sor.u32 %s190, %s191
      %s193 = ssub.s32 %s36, %s45
      %s194 = sor.u32 %s192, %s193
      %p195 = scmp.eq.s32.totalorder %s194, 0
      %s197 = sadd.s32 %s196, 1
      %s198 = scalar_select %p195, %s196, %s197
      %p201 = pneg %p195
      %p202 = scmp.eq.s32.totalorder %s27, 1
      %p203 = por %p201, %p202
      %p204 = scmp.ne.s32.totalorder %s196, %s199
      %p205 = scmp.eq.s32.totalorder %s27, 0
      %p206 = por %p204, %p205
      %p207 = scmp.ne.s32.totalorder %s196, %s199
      %p208 = scmp.eq.s32.totalorder %s32, 1
      %p209 = por %p207, %p208
      %p210 = scmp.ne.s32.totalorder %s199, %s200
      %p211 = scmp.eq.s32.totalorder %s32, 0
      %p212 = por %p210, %p211
      %p213 = scmp.ne.s32.totalorder %s199, %s200
      %p214 = scmp.eq.s32.totalorder %s33, 1
      %p215 = por %p213, %p214
      %p217 = scmp.ne.s32.totalorder %s200, %s216
      %p218 = scmp.eq.s32.totalorder %s33, 0
      %p219 = por %p217, %p218
      %s220 = ssub.s32 %s34, %s53
      %s221 = ssub.s32 %s35, %s49
      %s222 = sor.u32 %s220, %s221
      %s223 = ssub.s32 %s36, %s45
      %s224 = sor.u32 %s222, %s223
      %p225 = scmp.eq.s32.totalorder %s224, 0
      %s227 = sadd.s32 %s226, 1
      %s228 = scalar_select %p225, %s226, %s227
      %p231 = pneg %p225
      %p232 = scmp.eq.s32.totalorder %s27, 1
      %p233 = por %p231, %p232
      %p234 = scmp.ne.s32.totalorder %s226, %s229
      %p235 = scmp.eq.s32.totalorder %s27, 0
      %p236 = por %p234, %p235
      %p237 = scmp.ne.s32.totalorder %s226, %s229
      %p238 = scmp.eq.s32.totalorder %s32, 1
      %p239 = por %p237, %p238
      %p240 = scmp.ne.s32.totalorder %s229, %s230
      %p241 = scmp.eq.s32.totalorder %s32, 0
      %p242 = por %p240, %p241
      %p243 = scmp.ne.s32.totalorder %s229, %s230
      %p244 = scmp.eq.s32.totalorder %s33, 1
      %p245 = por %p243, %p244
      %p247 = scmp.ne.s32.totalorder %s230, %s246
      %p248 = scmp.eq.s32.totalorder %s33, 0
      %p249 = por %p247, %p248
      %s250 = ssub.s32 %s34, %s53
      %s251 = ssub.s32 %s35, %s49
      %s252 = sor.u32 %s250, %s251
      %s253 = ssub.s32 %s36, %s45
      %s254 = sor.u32 %s252, %s253
      %p255 = scmp.eq.s32.totalorder %s254, 0
      %s257 = sadd.s32 %s256, 1
      %s258 = scalar_select %p255, %s256, %s257
      %p261 = pneg %p255
      %p262 = scmp.eq.s32.totalorder %s27, 1
      %p263 = por %p261, %p262
      %p264 = scmp.ne.s32.totalorder %s256, %s259
      %p265 = scmp.eq.s32.totalorder %s27, 0
      %p266 = por %p264, %p265
      %p267 = scmp.ne.s32.totalorder %s256, %s259
      %p268 = scmp.eq.s32.totalorder %s32, 1
      %p269 = por %p267, %p268
      %p270 = scmp.ne.s32.totalorder %s259, %s260
      %p271 = scmp.eq.s32.totalorder %s32, 0
      %p272 = por %p270, %p271
      %p273 = scmp.ne.s32.totalorder %s259, %s260
      %p274 = scmp.eq.s32.totalorder %s33, 1
      %p275 = por %p273, %p274
      %p277 = scmp.ne.s32.totalorder %s260, %s276
      %p278 = scmp.eq.s32.totalorder %s33, 0
      %p279 = por %p277, %p278
      %p280 = scmp.le.s32.totalorder 1, %s27
      %p281 = scmp.lt.s32.totalorder %s27, 3
      %p282 = pnand %p280, %p281
      %p283 = pneg %p282
      // Predicated region
      $region9: #{tpu_custom_call.1} parent=5 // pred_check
        _
      $region10: #{tpu_custom_call.1} parent=5 // pred_check_branch
        %285 = sbr.rel (%p282) target = $region12
      $region11: #{tpu_custom_call.1} parent=5 // pred_region
        %s286 = ssub.s32 %s27, 1
        // Predicated region
        $region13: #{tpu_custom_call.1} parent=11 // pred_check
          %p287 = pneg %p156
        $region14: #{tpu_custom_call.1} parent=11 // pred_check_branch
          %289 = sbr.rel (%p287) target = $region16
        $region15: #{tpu_custom_call.1} parent=11 // pred_region
          %s291 = ssub.s32 1536, 1536
          %292 = vsyncadd [#allocation9], %s291
          %s293 = smul.addr %s39, 128
          %s294 = scalar_lea.hbm %s3, %s293
          %s295 = sshll.u32 [#allocation8], 4
          %s296 = int_to_ptr.vmem [resolvable:$true] %s295
          %301 = dma.hbm_to_vmem [thread:$0]  %s294, 1536, %s296, [#allocation9], 128, 128, 8
        $region16: #{tpu_custom_call.1} parent=11 // pred_fallthru
          _
        // Predicated region
        $region17: #{tpu_custom_call.1} parent=11 // pred_check
          %p302 = pneg %p182
        $region18: #{tpu_custom_call.1} parent=11 // pred_check_branch
          %304 = sbr.rel (%p302) target = $region20
        $region19: #{tpu_custom_call.1} parent=11 // pred_region
          %p305 = scmp.lt.s32.totalorder %s39, 0
          %s306 = scalar_select %p305, %s39, 0
          %s307 = scalar_lea.vmem %s4, %s306
        $region20: #{tpu_custom_call.1} parent=11 // pred_fallthru
          _
      $region12: #{tpu_custom_call.1} parent=5 // pred_fallthru
        _
      %p308 = scmp.lt.s32.totalorder %s27, 2
      // Predicated region
      $region21: #{tpu_custom_call.1} parent=5 // pred_check
        %p309 = pneg %p308
      $region22: #{tpu_custom_call.1} parent=5 // pred_check_branch
        %311 = sbr.rel (%p309) target = $region24
      $region23: #{tpu_custom_call.1} parent=5 // pred_region
        // Predicated region
        $region25: #{tpu_custom_call.1} parent=23 // pred_check
          %p312 = pneg %p68
        $region26: #{tpu_custom_call.1} parent=23 // pred_check_branch
          %314 = sbr.rel (%p312) target = $region28
        $region27: #{tpu_custom_call.1} parent=23 // pred_region
          %s315 = sand.u32 %s58, 1
          %s316 = scalar_lea.sflag [#allocation3], %s315
          %s317 = sand.u32 %s58, 1
          %s318 = smul.addr %s317, 8
          %s319 = scalar_lea.vmem [#allocation2], %s318
          %s321 = ssub.s32 128, 128
          %322 = vsyncadd %s316, %s321
          %s323 = sadd.s32 %s35, %s34
          %s324 = smul.addr %s323, 128
          %s325 = scalar_lea.hbm %s0, %s324
          %s327 = sshll.u32 %s319, 4
          %s328 = int_to_ptr.vmem [resolvable:$true] %s327
          %330 = dma.hbm_to_vmem [thread:$0]  %s325, 128, %s328, %s316
        $region28: #{tpu_custom_call.1} parent=23 // pred_fallthru
          _
        // Predicated region
        $region29: #{tpu_custom_call.1} parent=23 // pred_check
          %p331 = pneg %p96
        $region30: #{tpu_custom_call.1} parent=23 // pred_check_branch
          %333 = sbr.rel (%p331) target = $region32
        $region31: #{tpu_custom_call.1} parent=23 // pred_region
          %s334 = sand.u32 %s27, 1
          %s335 = scalar_lea.sflag [#allocation6], %s334
          %s336 = sand.u32 %s86, 1
          %s337 = smul.addr %s336, 8
          %s338 = scalar_lea.vmem [#allocation5], %s337
          %s340 = ssub.s32 128, 128
          %341 = vsyncadd %s335, %s340
          %s342 = sadd.s32 %s35, %s34
          %s343 = smul.addr %s342, 128
          %s344 = scalar_lea.hbm %s1, %s343
          %s346 = sshll.u32 %s338, 4
          %s347 = int_to_ptr.vmem [resolvable:$true] %s346
          %349 = dma.hbm_to_vmem [thread:$0]  %s344, 128, %s347, %s335
        $region32: #{tpu_custom_call.1} parent=23 // pred_fallthru
          _
        // Predicated region
        $region33: #{tpu_custom_call.1} parent=23 // pred_check
          %p350 = pneg %p124
        $region34: #{tpu_custom_call.1} parent=23 // pred_check_branch
          %352 = sbr.rel (%p350) target = $region36
        $region35: #{tpu_custom_call.1} parent=23 // pred_region
          %s353 = sand.u32 %s27, 1
          %s354 = scalar_lea.sflag [#allocation6], %s353
          %s355 = sand.u32 %s114, 1
          %s356 = smul.addr %s355, 8
          %s357 = scalar_lea.vmem [#allocation7], %s356
          %s359 = ssub.s32 128, 128
          %360 = vsyncadd %s354, %s359
          %s361 = sadd.s32 %s35, %s34
          %s362 = smul.addr %s361, 128
          %s363 = scalar_lea.hbm %s2, %s362
          %s365 = sshll.u32 %s357, 4
          %s366 = int_to_ptr.vmem [resolvable:$true] %s365
          %368 = dma.hbm_to_vmem [thread:$0]  %s363, 128, %s366, %s354
        $region36: #{tpu_custom_call.1} parent=23 // pred_fallthru
          _
      $region24: #{tpu_custom_call.1} parent=5 // pred_fallthru
        _
      %p369 = scmp.le.s32.totalorder 1, %s27
      %p370 = scmp.lt.s32.totalorder %s27, 3
      %p371 = pnand %p369, %p370
      %p372 = pneg %p371
      // Predicated region
      $region37: #{tpu_custom_call.1} parent=5 // pred_check
        _
      $region38: #{tpu_custom_call.1} parent=5 // pred_check_branch
        %374 = sbr.rel (%p371) target = $region40
      $region39: #{tpu_custom_call.1} parent=5 // pred_region
        %s375 = ssub.s32 %s27, 1
        %s376 = sand.u32 %s61, 1
        %s377 = scalar_lea.sflag [#allocation3], %s376
        %s378 = sand.u32 %s61, 1
        %s379 = smul.addr %s378, 8
        %s380 = scalar_lea.vmem [#allocation2], %s379
        // Predicated region
        $region41: #{tpu_custom_call.1} parent=39 // pred_check
          %p381 = pneg %p74
        $region42: #{tpu_custom_call.1} parent=39 // pred_check_branch
          %383 = sbr.rel (%p381) target = $region44
        $region43: #{tpu_custom_call.1} parent=39 // pred_region
          %384 = dma.done %s377, 128
        $region44: #{tpu_custom_call.1} parent=39 // pred_fallthru
          _
        %s385 = sand.u32 %s32, 1
        %s386 = scalar_lea.sflag [#allocation6], %s385
        %s387 = sand.u32 %s89, 1
        %s388 = smul.addr %s387, 8
        %s389 = scalar_lea.vmem [#allocation5], %s388
        // Predicated region
        $region45: #{tpu_custom_call.1} parent=39 // pred_check
          %p390 = pneg %p102
        $region46: #{tpu_custom_call.1} parent=39 // pred_check_branch
          %392 = sbr.rel (%p390) target = $region48
        $region47: #{tpu_custom_call.1} parent=39 // pred_region
          %393 = dma.done %s386, 128
        $region48: #{tpu_custom_call.1} parent=39 // pred_fallthru
          _
        %s394 = sand.u32 %s32, 1
        %s395 = scalar_lea.sflag [#allocation6], %s394
        %s396 = sand.u32 %s117, 1
        %s397 = smul.addr %s396, 8
        %s398 = scalar_lea.vmem [#allocation7], %s397
        // Predicated region
        $region49: #{tpu_custom_call.1} parent=39 // pred_check
          %p399 = pneg %p130
        $region50: #{tpu_custom_call.1} parent=39 // pred_check_branch
          %401 = sbr.rel (%p399) target = $region52
        $region51: #{tpu_custom_call.1} parent=39 // pred_region
          %402 = dma.done %s395, 128
        $region52: #{tpu_custom_call.1} parent=39 // pred_fallthru
          _
        // Predicated region
        $region53: #{tpu_custom_call.1} parent=39 // pred_check
          %p403 = pneg %p156
        $region54: #{tpu_custom_call.1} parent=39 // pred_check_branch
          %405 = sbr.rel (%p403) target = $region56
        $region55: #{tpu_custom_call.1} parent=39 // pred_region
          %406 = dma.done [#allocation9], 1536
        $region56: #{tpu_custom_call.1} parent=39 // pred_fallthru
          _
        %s407 = sand.u32 %s61, 1
        %s408 = scalar_lea.sflag [#allocation3], %s407
        %s409 = sand.u32 %s61, 1
        %s410 = smul.addr %s409, 8
        %s411 = scalar_lea.vmem [#allocation2], %s410
        %p412 = pneg %p74
        %p413 = pneg %p71
        %s414 = sand.u32 %s32, 1
        %s415 = scalar_lea.sflag [#allocation6], %s414
        %s416 = sand.u32 %s89, 1
        %s417 = smul.addr %s416, 8
        %s418 = scalar_lea.vmem [#allocation5], %s417
        %p419 = pneg %p102
        %p420 = pneg %p99
        %s421 = sand.u32 %s32, 1
        %s422 = scalar_lea.sflag [#allocation6], %s421
        %s423 = sand.u32 %s117, 1
        %s424 = smul.addr %s423, 8
        %s425 = scalar_lea.vmem [#allocation7], %s424
        %p426 = pneg %p130
        %p427 = pneg %p127
        %p428 = pneg %p156
        %p429 = pneg %p153
        %p430 = scmp.lt.s32.totalorder %s39, 0
        %s431 = scalar_select %p430, %s39, 0
        %s432 = scalar_lea.vmem %s4, %s431
        %p433 = pneg %p182
        %p434 = pneg %p179
        %p435 = pneg %p212
        %p436 = pneg %p209
        %s437 = sand.u32 %s199, 1
        %s438 = scalar_lea.sflag [#allocation4], %s437
        %s439 = sand.u32 %s199, 1
        %s440 = smul.addr %s439, 8
        %s441 = scalar_lea.vmem [#allocation10], %s440
        %p442 = pneg %p242
        %p443 = pneg %p239
        %s444 = sand.u32 %s32, 1
        %s445 = scalar_lea.sflag [#allocation12], %s444
        %s446 = sand.u32 %s229, 1
        %s447 = smul.addr %s446, 8
        %s448 = scalar_lea.vmem [#allocation11], %s447
        %p449 = pneg %p272
        %p450 = pneg %p269
        %s451 = sand.u32 %s32, 1
        %s452 = scalar_lea.sflag [#allocation12], %s451
        %s453 = sand.u32 %s259, 1
        %s454 = smul.addr %s453, 8
        %s455 = scalar_lea.vmem [#allocation13], %s454
        %p456 = scmp.lt.s32.totalorder %s39, 0
        %s457 = scalar_select %p456, %s39, 0
        %s458 = scalar_lea.vmem %s4, %s457
        %v459 = vld [vmem:[%s380] sm:$0xff]
        %v460 = vld [vmem:[#allocation8] sm:$0xff]
        %v461 = vld [vmem:[#allocation8 + $0x8] sm:$0xff]
        %v462 = vld [vmem:[#allocation8 + $0x10] sm:$0xff]
        %v463 = vld [vmem:[#allocation8 + $0x18] sm:$0xff]
        %v464 = vld [vmem:[%s458] sm:$0x1]
        %v466 = vlaneseq
        %v467 = vshrl.u32 %v466, 7
        %v468 = vsub.s32 0, %v467
        %v469 = vrot.slane %v464, %v468
        %vm471 = vcmask 261120
        %v473 = vsel %vm471, %v459, 0
        %475 = vmatprep.subr.mxu0 0.0
        %476 = vmatpush1.msra.mxu0 %v460
        %477 = vmatprep.subr.mxu0 0.0
        %478 = vmatpush1.msra.mxu0 %v461
        %479 = vmatprep.subr.mxu0 0.0
        %480 = vmatpush1.msra.mxu0 %v462
        %481 = vmatprep.subr.mxu0 0.0
        %482 = vmatpush1.msra.mxu0 %v463
        %483 = vmatprep.subr.mxu0 0.0
        %484 = vmatpush1.msra.mxu0 0.0
        %485 = vmatprep.subr.mxu0 0.0
        %486 = vmatpush1.msra.mxu0 0.0
        %487 = vmatprep.subr.mxu0 0.0
        %488 = vmatpush1.msra.mxu0 0.0
        %489 = vmatprep.subr.mxu0 0.0
        %490 = vmatpush1.msra.mxu0 0.0
        %491 = vmatprep.subr.mxu0 0.0
        %492 = vmatpush1.msra.mxu0 0.0
        %493 = vmatprep.subr.mxu0 0.0
        %494 = vmatpush1.msra.mxu0 0.0
        %495 = vmatprep.subr.mxu0 0.0
        %496 = vmatpush1.msra.mxu0 0.0
        %497 = vmatprep.subr.mxu0 0.0
        %498 = vmatpush1.msra.mxu0 0.0
        %499 = vmatprep.subr.mxu0 0.0
        %500 = vmatpush1.msra.mxu0 0.0
        %501 = vmatprep.subr.mxu0 0.0
        %502 = vmatpush1.msra.mxu0 0.0
        %503 = vmatprep.subr.mxu0 0.0
        %504 = vmatpush1.msra.mxu0 0.0
        %505 = vmatprep.subr.mxu0 0.0
        %506 = vmatpush1.msra.mxu0 0.0
        %507 = vmatprep.subr.mxu0 0.0
        %508 = vmatpush1.msra.mxu0 0.0
        %509 = vmatprep.subr.mxu0 0.0
        %510 = vmatpush1.msra.mxu0 0.0
        %511 = vmatprep.subr.mxu0 0.0
        %512 = vmatpush1.msra.mxu0 0.0
        %513 = vmatprep.subr.mxu0 0.0
        %514 = vmatpush1.msra.mxu0 0.0
        %515 = vmatprep.subr.mxu0 0.0
        %516 = vmatpush1.msra.mxu0 0.0
        %517 = vmatprep.subr.mxu0 0.0
        %518 = vmatpush1.msra.mxu0 0.0
        %519 = vmatprep.subr.mxu0 0.0
        %520 = vmatpush1.msra.mxu0 0.0
        %521 = vmatprep.subr.mxu0 0.0
        %522 = vmatpush1.msra.mxu0 0.0
        %523 = vmatprep.subr.mxu0 0.0
        %524 = vmatpush1.msra.mxu0 0.0
        %525 = vmatprep.subr.mxu0 0.0
        %526 = vmatpush1.msra.mxu0 0.0
        %527 = vmatprep.subr.mxu0 0.0
        %528 = vmatpush1.msra.mxu0 0.0
        %529 = vmatprep.subr.mxu0 0.0
        %530 = vmatpush1.msra.mxu0 0.0
        %531 = vmatprep.subr.mxu0 0.0
        %532 = vmatpush1.msra.mxu0 0.0
        %533 = vmatprep.subr.mxu0 0.0
        %534 = vmatpush1.msra.mxu0 0.0
        %535 = vmatprep.subr.mxu0 0.0
        %536 = vmatpush1.msra.mxu0 0.0
        %537 = vmatprep.subr.mxu0 0.0
        %538 = vmatpush1.msra.mxu0 0.0
        %539 = vmatprep.mubr.f32.mxu0 0.0
        %540 = vmatmul.mubr.f32.gmra.mrb[0].mxu0 %v473
        %v541 = vpop.f32.mrb[0].mxu0
        %v542 = vadd.f32 %v469, %v541
        %v543 = vpop.f32.mrb[0].mxu0
        %544 = vdwg.mxu0
        %v545 = vmul.f32 %v542, 0.35355338
        %546 = vst.msk [vmem:[%s441] sm:$0xff] %vm471, %v545
        %v547 = vld [vmem:[%s389] sm:$0xff]
        %s548 = scalar_lea.vmem [#allocation8], 32
        %v549 = vld [vmem:[%s548] sm:$0xff]
        %v550 = vld [vmem:[%s548 + $0x8] sm:$0xff]
        %v551 = vld [vmem:[%s548 + $0x10] sm:$0xff]
        %v552 = vld [vmem:[%s548 + $0x18] sm:$0xff]
        %s553 = scalar_lea.vmem %s458, 1
        %v554 = vld [vmem:[%s553] sm:$0x1]
        %v556 = vlaneseq
        %v557 = vshrl.u32 %v556, 7
        %v558 = vsub.s32 0, %v557
        %v559 = vrot.slane %v554, %v558
        %v562 = vsel %vm471, %v547, 0
        %564 = vmatprep.subr.mxu0 0.0
        %565 = vmatpush1.msra.mxu0 %v549
        %566 = vmatprep.subr.mxu0 0.0
        %567 = vmatpush1.msra.mxu0 %v550
        %568 = vmatprep.subr.mxu0 0.0
        %569 = vmatpush1.msra.mxu0 %v551
        %570 = vmatprep.subr.mxu0 0.0
        %571 = vmatpush1.msra.mxu0 %v552
        %572 = vmatprep.subr.mxu0 0.0
        %573 = vmatpush1.msra.mxu0 0.0
        %574 = vmatprep.subr.mxu0 0.0
        %575 = vmatpush1.msra.mxu0 0.0
        %576 = vmatprep.subr.mxu0 0.0
        %577 = vmatpush1.msra.mxu0 0.0
        %578 = vmatprep.subr.mxu0 0.0
        %579 = vmatpush1.msra.mxu0 0.0
        %580 = vmatprep.subr.mxu0 0.0
        %581 = vmatpush1.msra.mxu0 0.0
        %582 = vmatprep.subr.mxu0 0.0
        %583 = vmatpush1.msra.mxu0 0.0
        %584 = vmatprep.subr.mxu0 0.0
        %585 = vmatpush1.msra.mxu0 0.0
        %586 = vmatprep.subr.mxu0 0.0
        %587 = vmatpush1.msra.mxu0 0.0
        %588 = vmatprep.subr.mxu0 0.0
        %589 = vmatpush1.msra.mxu0 0.0
        %590 = vmatprep.subr.mxu0 0.0
        %591 = vmatpush1.msra.mxu0 0.0
        %592 = vmatprep.subr.mxu0 0.0
        %593 = vmatpush1.msra.mxu0 0.0
        %594 = vmatprep.subr.mxu0 0.0
        %595 = vmatpush1.msra.mxu0 0.0
        %596 = vmatprep.subr.mxu0 0.0
        %597 = vmatpush1.msra.mxu0 0.0
        %598 = vmatprep.subr.mxu0 0.0
        %599 = vmatpush1.msra.mxu0 0.0
        %600 = vmatprep.subr.mxu0 0.0
        %601 = vmatpush1.msra.mxu0 0.0
        %602 = vmatprep.subr.mxu0 0.0
        %603 = vmatpush1.msra.mxu0 0.0
        %604 = vmatprep.subr.mxu0 0.0
        %605 = vmatpush1.msra.mxu0 0.0
        %606 = vmatprep.subr.mxu0 0.0
        %607 = vmatpush1.msra.mxu0 0.0
        %608 = vmatprep.subr.mxu0 0.0
        %609 = vmatpush1.msra.mxu0 0.0
        %610 = vmatprep.subr.mxu0 0.0
        %611 = vmatpush1.msra.mxu0 0.0
        %612 = vmatprep.subr.mxu0 0.0
        %613 = vmatpush1.msra.mxu0 0.0
        %614 = vmatprep.subr.mxu0 0.0
        %615 = vmatpush1.msra.mxu0 0.0
        %616 = vmatprep.subr.mxu0 0.0
        %617 = vmatpush1.msra.mxu0 0.0
        %618 = vmatprep.subr.mxu0 0.0
        %619 = vmatpush1.msra.mxu0 0.0
        %620 = vmatprep.subr.mxu0 0.0
        %621 = vmatpush1.msra.mxu0 0.0
        %622 = vmatprep.subr.mxu0 0.0
        %623 = vmatpush1.msra.mxu0 0.0
        %624 = vmatprep.subr.mxu0 0.0
        %625 = vmatpush1.msra.mxu0 0.0
        %626 = vmatprep.subr.mxu0 0.0
        %627 = vmatpush1.msra.mxu0 0.0
        %628 = vmatprep.mubr.f32.mxu0 0.0
        %629 = vmatmul.mubr.f32.gmra.mrb[0].mxu0 %v562
        %v630 = vpop.f32.mrb[0].mxu0
        %v631 = vadd.f32 %v559, %v630
        %v632 = vpop.f32.mrb[0].mxu0
        %633 = vdwg.mxu0
        %634 = vst.msk [vmem:[%s448] sm:$0xff] %vm471, %v631
        %v635 = vld [vmem:[%s398] sm:$0xff]
        %s636 = scalar_lea.vmem [#allocation8], 64
        %v637 = vld [vmem:[%s636] sm:$0xff]
        %v638 = vld [vmem:[%s636 + $0x8] sm:$0xff]
        %v639 = vld [vmem:[%s636 + $0x10] sm:$0xff]
        %v640 = vld [vmem:[%s636 + $0x18] sm:$0xff]
        %s641 = scalar_lea.vmem %s458, 2
        %v642 = vld [vmem:[%s641] sm:$0x1]
        %v644 = vlaneseq
        %v645 = vshrl.u32 %v644, 7
        %v646 = vsub.s32 0, %v645
        %v647 = vrot.slane %v642, %v646
        %v650 = vsel %vm471, %v635, 0
        %652 = vmatprep.subr.mxu0 0.0
        %653 = vmatpush1.msra.mxu0 %v637
        %654 = vmatprep.subr.mxu0 0.0
        %655 = vmatpush1.msra.mxu0 %v638
        %656 = vmatprep.subr.mxu0 0.0
        %657 = vmatpush1.msra.mxu0 %v639
        %658 = vmatprep.subr.mxu0 0.0
        %659 = vmatpush1.msra.mxu0 %v640
        %660 = vmatprep.subr.mxu0 0.0
        %661 = vmatpush1.msra.mxu0 0.0
        %662 = vmatprep.subr.mxu0 0.0
        %663 = vmatpush1.msra.mxu0 0.0
        %664 = vmatprep.subr.mxu0 0.0
        %665 = vmatpush1.msra.mxu0 0.0
        %666 = vmatprep.subr.mxu0 0.0
        %667 = vmatpush1.msra.mxu0 0.0
        %668 = vmatprep.subr.mxu0 0.0
        %669 = vmatpush1.msra.mxu0 0.0
        %670 = vmatprep.subr.mxu0 0.0
        %671 = vmatpush1.msra.mxu0 0.0
        %672 = vmatprep.subr.mxu0 0.0
        %673 = vmatpush1.msra.mxu0 0.0
        %674 = vmatprep.subr.mxu0 0.0
        %675 = vmatpush1.msra.mxu0 0.0
        %676 = vmatprep.subr.mxu0 0.0
        %677 = vmatpush1.msra.mxu0 0.0
        %678 = vmatprep.subr.mxu0 0.0
        %679 = vmatpush1.msra.mxu0 0.0
        %680 = vmatprep.subr.mxu0 0.0
        %681 = vmatpush1.msra.mxu0 0.0
        %682 = vmatprep.subr.mxu0 0.0
        %683 = vmatpush1.msra.mxu0 0.0
        %684 = vmatprep.subr.mxu0 0.0
        %685 = vmatpush1.msra.mxu0 0.0
        %686 = vmatprep.subr.mxu0 0.0
        %687 = vmatpush1.msra.mxu0 0.0
        %688 = vmatprep.subr.mxu0 0.0
        %689 = vmatpush1.msra.mxu0 0.0
        %690 = vmatprep.subr.mxu0 0.0
        %691 = vmatpush1.msra.mxu0 0.0
        %692 = vmatprep.subr.mxu0 0.0
        %693 = vmatpush1.msra.mxu0 0.0
        %694 = vmatprep.subr.mxu0 0.0
        %695 = vmatpush1.msra.mxu0 0.0
        %696 = vmatprep.subr.mxu0 0.0
        %697 = vmatpush1.msra.mxu0 0.0
        %698 = vmatprep.subr.mxu0 0.0
        %699 = vmatpush1.msra.mxu0 0.0
        %700 = vmatprep.subr.mxu0 0.0
        %701 = vmatpush1.msra.mxu0 0.0
        %702 = vmatprep.subr.mxu0 0.0
        %703 = vmatpush1.msra.mxu0 0.0
        %704 = vmatprep.subr.mxu0 0.0
        %705 = vmatpush1.msra.mxu0 0.0
        %706 = vmatprep.subr.mxu0 0.0
        %707 = vmatpush1.msra.mxu0 0.0
        %708 = vmatprep.subr.mxu0 0.0
        %709 = vmatpush1.msra.mxu0 0.0
        %710 = vmatprep.subr.mxu0 0.0
        %711 = vmatpush1.msra.mxu0 0.0
        %712 = vmatprep.subr.mxu0 0.0
        %713 = vmatpush1.msra.mxu0 0.0
        %714 = vmatprep.subr.mxu0 0.0
        %715 = vmatpush1.msra.mxu0 0.0
        %716 = vmatprep.mubr.f32.mxu0 0.0
        %717 = vmatmul.mubr.f32.gmra.mrb[0].mxu0 %v650
        %v718 = vpop.f32.mrb[0].mxu0
        %v719 = vadd.f32 %v647, %v718
        %v720 = vpop.f32.mrb[0].mxu0
        %721 = vdwg.mxu0
        %722 = vst.msk [vmem:[%s455] sm:$0xff] %vm471, %v719
        %s723 = sand.u32 %s199, 1
        %s724 = scalar_lea.sflag [#allocation4], %s723
        %s725 = sand.u32 %s199, 1
        %s726 = smul.addr %s725, 8
        %s727 = scalar_lea.vmem [#allocation10], %s726
        %s728 = sand.u32 %s32, 1
        %s729 = scalar_lea.sflag [#allocation12], %s728
        %s730 = sand.u32 %s229, 1
        %s731 = smul.addr %s730, 8
        %s732 = scalar_lea.vmem [#allocation11], %s731
        %s733 = sand.u32 %s32, 1
        %s734 = scalar_lea.sflag [#allocation12], %s733
        %s735 = sand.u32 %s259, 1
        %s736 = smul.addr %s735, 8
        %s737 = scalar_lea.vmem [#allocation13], %s736
        // Predicated region
        $region57: #{tpu_custom_call.1} parent=39 // pred_check
          %p738 = pneg %p209
        $region58: #{tpu_custom_call.1} parent=39 // pred_check_branch
          %740 = sbr.rel (%p738) target = $region60
        $region59: #{tpu_custom_call.1} parent=39 // pred_region
          %s742 = ssub.s32 128, 128
          %743 = vsyncadd %s724, %s742
          %s744 = sadd.s32 %s39, %s38
          %s745 = sadd.s32 %s744, %s37
          %s746 = smul.addr %s745, 128
          %s747 = scalar_lea.hbm %s5, %s746
          %s749 = sshll.u32 %s727, 4
          %s750 = int_to_ptr.vmem [resolvable:$true] %s749
          %752 = dma.vmem_to_hbm [thread:$0]  %s750, 128, %s747, %s724
        $region60: #{tpu_custom_call.1} parent=39 // pred_fallthru
          _
        // Predicated region
        $region61: #{tpu_custom_call.1} parent=39 // pred_check
          %p753 = pneg %p239
        $region62: #{tpu_custom_call.1} parent=39 // pred_check_branch
          %755 = sbr.rel (%p753) target = $region64
        $region63: #{tpu_custom_call.1} parent=39 // pred_region
          %s757 = ssub.s32 128, 128
          %758 = vsyncadd %s729, %s757
          %s759 = sadd.s32 %s39, %s38
          %s760 = sadd.s32 %s759, %s37
          %s761 = smul.addr %s760, 128
          %s762 = scalar_lea.hbm %s6, %s761
          %s764 = sshll.u32 %s732, 4
          %s765 = int_to_ptr.vmem [resolvable:$true] %s764
          %767 = dma.vmem_to_hbm [thread:$0]  %s765, 128, %s762, %s729
        $region64: #{tpu_custom_call.1} parent=39 // pred_fallthru
          _
        // Predicated region
        $region65: #{tpu_custom_call.1} parent=39 // pred_check
          %p768 = pneg %p269
        $region66: #{tpu_custom_call.1} parent=39 // pred_check_branch
          %770 = sbr.rel (%p768) target = $region68
        $region67: #{tpu_custom_call.1} parent=39 // pred_region
          %s772 = ssub.s32 128, 128
          %773 = vsyncadd %s734, %s772
          %s774 = sadd.s32 %s39, %s38
          %s775 = sadd.s32 %s774, %s37
          %s776 = smul.addr %s775, 128
          %s777 = scalar_lea.hbm %s7, %s776
          %s779 = sshll.u32 %s737, 4
          %s780 = int_to_ptr.vmem [resolvable:$true] %s779
          %782 = dma.vmem_to_hbm [thread:$0]  %s780, 128, %s777, %s734
        $region68: #{tpu_custom_call.1} parent=39 // pred_fallthru
          _
      $region40: #{tpu_custom_call.1} parent=5 // pred_fallthru
        _
      %p783 = scmp.le.s32.totalorder 2, %s27
      // Predicated region
      $region69: #{tpu_custom_call.1} parent=5 // pred_check
        %p784 = pneg %p783
      $region70: #{tpu_custom_call.1} parent=5 // pred_check_branch
        %786 = sbr.rel (%p784) target = $region72
      $region71: #{tpu_custom_call.1} parent=5 // pred_region
        %s787 = ssub.s32 %s27, 2
        // Predicated region
        $region73: #{tpu_custom_call.1} parent=71 // pred_check
          %p788 = pneg %p215
        $region74: #{tpu_custom_call.1} parent=71 // pred_check_branch
          %790 = sbr.rel (%p788) target = $region76
        $region75: #{tpu_custom_call.1} parent=71 // pred_region
          %s791 = sand.u32 %s200, 1
          %s792 = scalar_lea.sflag [#allocation4], %s791
          %s793 = sand.u32 %s200, 1
          %s794 = smul.addr %s793, 8
          %s795 = scalar_lea.vmem [#allocation10], %s794
          %796 = dma.done %s792, 128
        $region76: #{tpu_custom_call.1} parent=71 // pred_fallthru
          _
        // Predicated region
        $region77: #{tpu_custom_call.1} parent=71 // pred_check
          %p797 = pneg %p245
        $region78: #{tpu_custom_call.1} parent=71 // pred_check_branch
          %799 = sbr.rel (%p797) target = $region80
        $region79: #{tpu_custom_call.1} parent=71 // pred_region
          %s800 = sand.u32 %s33, 1
          %s801 = scalar_lea.sflag [#allocation12], %s800
          %s802 = sand.u32 %s230, 1
          %s803 = smul.addr %s802, 8
          %s804 = scalar_lea.vmem [#allocation11], %s803
          %805 = dma.done %s801, 128
        $region80: #{tpu_custom_call.1} parent=71 // pred_fallthru
          _
        // Predicated region
        $region81: #{tpu_custom_call.1} parent=71 // pred_check
          %p806 = pneg %p275
        $region82: #{tpu_custom_call.1} parent=71 // pred_check_branch
          %808 = sbr.rel (%p806) target = $region84
        $region83: #{tpu_custom_call.1} parent=71 // pred_region
          %s809 = sand.u32 %s33, 1
          %s810 = scalar_lea.sflag [#allocation12], %s809
          %s811 = sand.u32 %s260, 1
          %s812 = smul.addr %s811, 8
          %s813 = scalar_lea.vmem [#allocation13], %s812
          %814 = dma.done %s810, 128
        $region84: #{tpu_custom_call.1} parent=71 // pred_fallthru
          _
      $region72: #{tpu_custom_call.1} parent=5 // pred_fallthru
        _
    $region6: #{tpu_custom_call.1} parent=1 // loop_footer
      %s31 = sadd.s32 1, %s27
    $region7: #{tpu_custom_call.1} parent=1 // loop_footer_branch
      %26 = sbr.rel target = $region3
    $region8: #{tpu_custom_call.1} parent=1 // loop_exit
      _
    %815 = vsyncpa [#allocation3], 1
    %s816 = scalar_lea.sflag [#allocation3], 1
    %817 = vsyncpa %s816, 1
    %818 = vsyncpa [#allocation6], 1
    %s819 = scalar_lea.sflag [#allocation6], 1
    %820 = vsyncpa %s819, 1
    %821 = vsyncpa [#allocation9], 1
    %822 = vsyncpa [#allocation4], 1
    %s823 = scalar_lea.sflag [#allocation4], 1
    %824 = vsyncpa %s823, 1
    %825 = vsyncpa [#allocation12], 1
    %s826 = scalar_lea.sflag [#allocation12], 1
    %827 = vsyncpa %s826, 1

</llo_original>
